<compile_context>
chip_gen: v7x
topology: tpu7x:2x2x1
jax: 0.10.0
libtpu: 0.0.40
codegen_flags: <defaults>
</compile_context>

<pallas_src>
import jax
import jax.numpy as jnp
from jax.experimental import pallas as pl
from jax.experimental.pallas import tpu as pltpu


def _attention_kernel(x_ref, tri_ref, w1_ref, b1_ref, w2_ref, bcast_ref, o_ref):
    t = x_ref.shape[1]                      # sequence length (static)
    xp = x_ref[0]                           # (T, Bb*D) f32, column c = d*Bb + j

    # attn_1 + tanh + attn_2 entirely in the packed layout (block-diag weights).
    h = jnp.tanh(
        jnp.dot(xp, w1_ref[...], preferred_element_type=jnp.float32) + b1_ref[...])
    s2 = jnp.dot(h, w2_ref[...], preferred_element_type=jnp.float32)   # (T, Bb)
    # attn_2.bias is a constant added to every score; softmax is shift
    # invariant, so it is dropped here.

    # Numerically stable softmax numerators (global shift; scores are tanh
    # bounded, |s| <= ||w2||_1, so exp cannot hit the underflow regime here).
    m = jnp.max(s2, axis=0, keepdims=True)                              # (1, Bb)
    e = jnp.exp(s2 - m)                                                 # (T, Bb)

    # Causal denominator: Hillis-Steele inclusive prefix sum along T on the
    # small (T, Bb) slab -- VPU/XLU work that hides under the MXU tri matmul.
    den = e
    shift = 1
    while shift < t:
        den = den + jnp.concatenate(
            [jnp.zeros((shift, den.shape[1]), jnp.float32), den[: t - shift, :]],
            axis=0)
        shift *= 2

    # Broadcast e (T, Bb) -> (T, Bb*D) with a tiny 0/1 matmul (stays packed).
    e_full = jnp.dot(e, bcast_ref[...], preferred_element_type=jnp.float32)
    ex = (e_full * xp).astype(jnp.bfloat16)

    # Causal prefix sums of e*x: one bf16 triangular matmul, f32 accumulation.
    num = jnp.dot(tri_ref[...], ex, preferred_element_type=jnp.float32)

    inv = pl.reciprocal(den, approx=True)                               # EUP, not VALU
    inv_full = jnp.dot(inv, bcast_ref[...], preferred_element_type=jnp.float32)
    o_ref[0] = (num * inv_full).astype(o_ref.dtype)

    # TODO(synk): `return_attention=True` path (per-timestep ragged numpy
    # attention-weight lists) has no clean in-kernel equivalent.


def _choose_batch_block(B, D):
    """Pick the batch-pack factor Bb (B is padded up to a multiple of Bb).

    Targets Bb*D in [128, 512] lanes (lane-dense stores, 256-wide MXU fill on
    v6e/v7x) while keeping >= 2 grid steps when B allows (megacore / v7x
    2-TensorCore sharding of the "parallel" batch axis)."""
    D = max(int(D), 1)
    B = max(int(B), 1)
    dense = -(-128 // D)            # smallest Bb with Bb*D >= 128 (lane-dense)
    pref = -(-256 // D)             # Bb*D >= 256 (256-wide MXU)
    cap = max(1, 512 // D)          # keep Bb*D <= ~512 (VMEM / pad-waste guard)
    dense = max(1, min(dense, cap))
    pref = max(1, min(pref, cap))
    if B >= 2 * pref:               # wide pack AND >= 2 grid steps
        return pref
    if B >= 2 * dense:
        return dense
    # Small batch: pad up to lane-dense, but never more than ~2x padded waste.
    return max(1, min(dense, 2 * B))


def _vmem_limit_bytes():
    """Generation-aware scoped-VMEM limit (~80% of physical VMEM)."""
    cap = 64 * 1024 * 1024
    try:
        info = pltpu.get_tpu_info()
        cap = int(getattr(info, "vmem_capacity_bytes", cap)) or cap
    except Exception:
        pass
    return int(cap * 4) // 5


def attention_forward(x, w1, b1, w2, b2):
    """x: (B, T, D); w1: (D, D); b1: (D,); w2: (1, D); b2: (1,) — PyTorch shapes.

    Returns the context vectors (B, T, D). b2 is accepted for API fidelity but
    cannot affect the output (softmax shift invariance)."""
    del b2
    B, T, D = x.shape
    bb = _choose_batch_block(B, D)
    g = -(-B // bb)                 # grid steps (NOTE: prefer even g on v7x)
    bp = g * bb                     # padded batch
    bd = bb * D                     # packed lane width

    x = x.astype(jnp.float32)
    if bp != B:
        x = jnp.concatenate([x, jnp.zeros((bp - B, T, D), jnp.float32)], axis=0)

    # Interleaved lane packing: column c = d*bb + j (batch index j fastest),
    # so per-batch (T, Bb) quantities broadcast to (T, Bb*D) with a 0/1 kron.
    xg = x.reshape(g, bb, T, D).transpose(0, 2, 3, 1).reshape(g, T, bd)

    eye = jnp.eye(bb, dtype=jnp.float32)
    w1t = jnp.asarray(w1, jnp.float32).T                     # (D, D)  = attn_1.weight^T
    w1_bd = jnp.kron(w1t, eye)                               # (Bb*D, Bb*D) block-diag
    w2t = jnp.asarray(w2, jnp.float32).T                     # (D, 1)  = attn_2.weight^T
    w2_bd = jnp.kron(w2t, eye)                               # (Bb*D, Bb)
    b1_p = jnp.kron(jnp.asarray(b1, jnp.float32).reshape(1, D),
                    jnp.ones((1, bb), jnp.float32))          # (1, Bb*D)
    bcast = jnp.kron(jnp.ones((1, D), jnp.float32), eye)     # (Bb, Bb*D) broadcaster
    tri = jnp.tril(jnp.ones((T, T), jnp.bfloat16))           # causal mask (exact in bf16)

    def _const_spec(shape):
        zeros = (0,) * len(shape)
        # Constant index_map -> DMA'd once; single-buffered (2nd buffer is waste).
        return pl.BlockSpec(shape, lambda i: zeros, pipeline_mode=pl.Buffered(1))

    out_packed = pl.pallas_call(
        _attention_kernel,
        out_shape=jax.ShapeDtypeStruct((g, T, bd), jnp.float32),
        grid_spec=pltpu.PrefetchScalarGridSpec(
            num_scalar_prefetch=0,
            grid=(g,),
            in_specs=[
                pl.BlockSpec((1, T, bd), lambda i: (i, 0, 0)),
                _const_spec((T, T)),       # tri (bf16)
                _const_spec((bd, bd)),     # block-diag attn_1 weight
                _const_spec((1, bd)),      # packed attn_1 bias
                _const_spec((bd, bb)),     # block-diag attn_2 weight
                _const_spec((bb, bd)),     # (T,Bb) -> (T,Bb*D) broadcaster
            ],
            out_specs=pl.BlockSpec((1, T, bd), lambda i: (i, 0, 0)),
        ),
        compiler_params=pltpu.CompilerParams(
            dimension_semantics=("parallel",),
            vmem_limit_bytes=_vmem_limit_bytes(),
        ),
    )(xg, tri, w1_bd, b1_p, w2_bd, bcast)

    # Unpack (G, T, Bb*D) -> (B, T, D) and drop batch padding.
    out = out_packed.reshape(g, T, D, bb).transpose(0, 3, 1, 2).reshape(bp, T, D)
    return out[:B]


def attention_reference(x, w1, b1, w2, b2):
    """Pure-JAX reference mirroring the PyTorch forward loop."""
    h = jnp.tanh(jnp.einsum("btd,ed->bte", x, w1) + b1)
    s = jnp.einsum("btd,od->bto", h, w2) + b2            # (B, T, 1)
    B, T, D = x.shape
    ctxs = []
    for t in range(T):
        w = jax.nn.softmax(s[:, : t + 1, :], axis=1)
        ctxs.append(jnp.sum(w * x[:, : t + 1, :], axis=1))
    return jnp.stack(ctxs, axis=1)                        # (B, T, D)


if __name__ == "__main__":
    B, T, D = 2, 8, 32  # batch, sequence_length, feature_dim

    key = jax.random.PRNGKey(0)
    kx, k1, k2 = jax.random.split(key, 3)

    x = jax.random.normal(kx, (B, T, D), dtype=jnp.float32)

    # Deterministic "xavier_uniform_" init for the two Linear layers.
    bound1 = (6.0 / (D + D)) ** 0.5
    w1 = jax.random.uniform(k1, (D, D), jnp.float32, -bound1, bound1)   # attn_1.weight
    b1 = jnp.zeros((D,), jnp.float32)                                   # attn_1.bias
    bound2 = (6.0 / (D + 1)) ** 0.5
    w2 = jax.random.uniform(k2, (1, D), jnp.float32, -bound2, bound2)   # attn_2.weight
    b2 = jnp.zeros((1,), jnp.float32)                                   # attn_2.bias

    out = attention_forward(x, w1, b1, w2, b2)
    out = jax.block_until_ready(out)

    ref = attention_reference(x, w1, b1, w2, b2)
    assert out.shape == (B, T, D)
    # bf16 e*x operand on the tri matmul (+ approx EUP reciprocal) -> loosened
    # tolerance; f32 accumulation keeps the error well inside this bound.
    assert jnp.allclose(out, ref, atol=2e-2, rtol=2e-2), "mismatch vs reference"

    print("KERNEL_OK")
</pallas_src>

<mosaic_0001>
module attributes {stable_mosaic.version = 11 : i64} {
  func.func @_attention_kernel(%arg0: i32, %arg1: memref<1x8x128xf32, #tpu.memory_space<vmem>>, %arg2: memref<8x8xbf16, #tpu.memory_space<vmem>>, %arg3: memref<128x128xf32, #tpu.memory_space<vmem>>, %arg4: memref<1x128xf32, #tpu.memory_space<vmem>>, %arg5: memref<128x4xf32, #tpu.memory_space<vmem>>, %arg6: memref<4x128xf32, #tpu.memory_space<vmem>>, %arg7: memref<1x8x128xf32, #tpu.memory_space<vmem>>) attributes {dimension_semantics = [#tpu.dimension_semantics<parallel>], iteration_bounds = array<i64: 1>, scalar_prefetch = 0 : i64, scratch_operands = 0 : i64, tpu.core_type = #tpu.core_type<tc>, window_params = [{transform_indices = @transform_0, window_bounds = array<i64: 1, 8, 128>}, {pipeline_mode = #tpu.pipeline_mode<synchronous>, transform_indices = @transform_1, window_bounds = array<i64: 8, 8>}, {pipeline_mode = #tpu.pipeline_mode<synchronous>, transform_indices = @transform_2, window_bounds = array<i64: 128, 128>}, {pipeline_mode = #tpu.pipeline_mode<synchronous>, transform_indices = @transform_3, window_bounds = array<i64: 1, 128>}, {pipeline_mode = #tpu.pipeline_mode<synchronous>, transform_indices = @transform_4, window_bounds = array<i64: 128, 4>}, {pipeline_mode = #tpu.pipeline_mode<synchronous>, transform_indices = @transform_5, window_bounds = array<i64: 4, 128>}, {transform_indices = @transform_6, window_bounds = array<i64: 1, 8, 128>}]} {
    %c0 = arith.constant 0 : index
    %c0_0 = arith.constant 0 : index
    %c0_1 = arith.constant 0 : index
    %0 = vector.load %arg1[%c0, %c0_0, %c0_1] : memref<1x8x128xf32, #tpu.memory_space<vmem>>, vector<1x8x128xf32>
    %1 = vector.shape_cast %0 : vector<1x8x128xf32> to vector<8x128xf32>
    %c0_2 = arith.constant 0 : index
    %c0_3 = arith.constant 0 : index
    %2 = vector.load %arg3[%c0_2, %c0_3] : memref<128x128xf32, #tpu.memory_space<vmem>>, vector<128x128xf32>
    %cst = arith.constant dense<0.000000e+00> : vector<8x128xf32>
    %3 = tpu.matmul %1, %2, %cst {dimension_numbers = #tpu.dot_dimension_numbers<[1], [0], [0], [1], [0, 0, 1, 1], [], []>} : vector<8x128xf32>, vector<128x128xf32>, vector<8x128xf32> -> vector<8x128xf32>
    %c0_4 = arith.constant 0 : index
    %c0_5 = arith.constant 0 : index
    %4 = vector.load %arg4[%c0_4, %c0_5] : memref<1x128xf32, #tpu.memory_space<vmem>>, vector<1x128xf32>
    %5 = vector.broadcast %4 : vector<1x128xf32> to vector<8x128xf32>
    %6 = arith.addf %3, %5 : vector<8x128xf32>
    %7 = math.tanh %6 : vector<8x128xf32>
    %c0_6 = arith.constant 0 : index
    %c0_7 = arith.constant 0 : index
    %8 = vector.load %arg5[%c0_6, %c0_7] : memref<128x4xf32, #tpu.memory_space<vmem>>, vector<128x4xf32>
    %cst_8 = arith.constant dense<0.000000e+00> : vector<8x4xf32>
    %9 = tpu.matmul %7, %8, %cst_8 {dimension_numbers = #tpu.dot_dimension_numbers<[1], [0], [0], [1], [0, 0, 1, 1], [], []>} : vector<8x128xf32>, vector<128x4xf32>, vector<8x4xf32> -> vector<8x4xf32>
    %cst_9 = arith.constant dense<0xFF800000> : vector<4xf32>
    %10 = vector.multi_reduction <maximumf>, %9, %cst_9 [0] : vector<8x4xf32> to vector<4xf32>
    %11 = vector.shape_cast %10 : vector<4xf32> to vector<1x4xf32>
    %12 = vector.broadcast %11 : vector<1x4xf32> to vector<8x4xf32>
    %13 = arith.subf %9, %12 : vector<8x4xf32>
    %14 = math.exp %13 : vector<8x4xf32>
    %cst_10 = arith.constant 0.000000e+00 : f32
    %15 = vector.broadcast %cst_10 : f32 to vector<1x4xf32>
    %16 = vector.extract_strided_slice %14 {offsets = [0, 0], sizes = [7, 4], strides = [1, 1]} : vector<8x4xf32> to vector<7x4xf32>
    %17 = tpu.concatenate %15, %16 in 0 : vector<1x4xf32>, vector<7x4xf32> -> vector<8x4xf32>
    %18 = arith.addf %14, %17 : vector<8x4xf32>
    %cst_11 = arith.constant 0.000000e+00 : f32
    %19 = vector.broadcast %cst_11 : f32 to vector<2x4xf32>
    %20 = vector.extract_strided_slice %18 {offsets = [0, 0], sizes = [6, 4], strides = [1, 1]} : vector<8x4xf32> to vector<6x4xf32>
    %21 = tpu.concatenate %19, %20 in 0 : vector<2x4xf32>, vector<6x4xf32> -> vector<8x4xf32>
    %22 = arith.addf %18, %21 : vector<8x4xf32>
    %cst_12 = arith.constant 0.000000e+00 : f32
    %23 = vector.broadcast %cst_12 : f32 to vector<4x4xf32>
    %24 = vector.extract_strided_slice %22 {offsets = [0, 0], sizes = [4, 4], strides = [1, 1]} : vector<8x4xf32> to vector<4x4xf32>
    %25 = tpu.concatenate %23, %24 in 0 : vector<4x4xf32>, vector<4x4xf32> -> vector<8x4xf32>
    %26 = arith.addf %22, %25 : vector<8x4xf32>
    %c0_13 = arith.constant 0 : index
    %c0_14 = arith.constant 0 : index
    %27 = vector.load %arg6[%c0_13, %c0_14] : memref<4x128xf32, #tpu.memory_space<vmem>>, vector<4x128xf32>
    %cst_15 = arith.constant dense<0.000000e+00> : vector<8x128xf32>
    %28 = tpu.matmul %14, %27, %cst_15 {dimension_numbers = #tpu.dot_dimension_numbers<[1], [0], [0], [1], [0, 0, 1, 1], [], []>} : vector<8x4xf32>, vector<4x128xf32>, vector<8x128xf32> -> vector<8x128xf32>
    %29 = arith.mulf %28, %1 : vector<8x128xf32>
    %30 = arith.truncf %29 : vector<8x128xf32> to vector<8x128xbf16>
    %c0_16 = arith.constant 0 : index
    %c0_17 = arith.constant 0 : index
    %31 = vector.load %arg2[%c0_16, %c0_17] : memref<8x8xbf16, #tpu.memory_space<vmem>>, vector<8x8xbf16>
    %cst_18 = arith.constant dense<0.000000e+00> : vector<8x128xf32>
    %32 = tpu.matmul %31, %30, %cst_18 {dimension_numbers = #tpu.dot_dimension_numbers<[1], [0], [0], [1], [0, 0, 1, 1], [], []>} : vector<8x8xbf16>, vector<8x128xbf16>, vector<8x128xf32> -> vector<8x128xf32>
    %33 = tpu.reciprocal %26 {approx = true} : vector<8x4xf32> -> vector<8x4xf32>
    %c0_19 = arith.constant 0 : index
    %c0_20 = arith.constant 0 : index
    %34 = vector.load %arg6[%c0_19, %c0_20] : memref<4x128xf32, #tpu.memory_space<vmem>>, vector<4x128xf32>
    %cst_21 = arith.constant dense<0.000000e+00> : vector<8x128xf32>
    %35 = tpu.matmul %33, %34, %cst_21 {dimension_numbers = #tpu.dot_dimension_numbers<[1], [0], [0], [1], [0, 0, 1, 1], [], []>} : vector<8x4xf32>, vector<4x128xf32>, vector<8x128xf32> -> vector<8x128xf32>
    %36 = arith.mulf %32, %35 : vector<8x128xf32>
    %c0_22 = arith.constant 0 : index
    %c0_23 = arith.constant 0 : index
    %c0_24 = arith.constant 0 : index
    %37 = vector.load %arg7[%c0_22, %c0_23, %c0_24] : memref<1x8x128xf32, #tpu.memory_space<vmem>>, vector<1x8x128xf32>
    %38 = vector.shape_cast %37 : vector<1x8x128xf32> to vector<8x128xf32>
    %39 = vector.shape_cast %36 : vector<8x128xf32> to vector<1x8x128xf32>
    tpu.vector_store %arg7[%c0_22, %c0_23, %c0_24], %39 {strides = array<i32>} : memref<1x8x128xf32, #tpu.memory_space<vmem>>, vector<1x8x128xf32>,
    return
  }
  func.func @transform_0(%arg0: i32) -> (i32, i32, i32) {
    %c0_i32 = arith.constant 0 : i32
    %c0_i32_0 = arith.constant 0 : i32
    %c0_i32_1 = arith.constant 0 : i32
    return %arg0, %c0_i32, %c0_i32_0 : i32, i32, i32
  }
  func.func @transform_1(%arg0: i32) -> (i32, i32) {
    %c0_i32 = arith.constant 0 : i32
    %c0_i32_0 = arith.constant 0 : i32
    %c0_i32_1 = arith.constant 0 : i32
    return %c0_i32, %c0_i32_0 : i32, i32
  }
  func.func @transform_2(%arg0: i32) -> (i32, i32) {
    %c0_i32 = arith.constant 0 : i32
    %c0_i32_0 = arith.constant 0 : i32
    %c0_i32_1 = arith.constant 0 : i32
    return %c0_i32, %c0_i32_0 : i32, i32
  }
  func.func @transform_3(%arg0: i32) -> (i32, i32) {
    %c0_i32 = arith.constant 0 : i32
    %c0_i32_0 = arith.constant 0 : i32
    %c0_i32_1 = arith.constant 0 : i32
    return %c0_i32, %c0_i32_0 : i32, i32
  }
  func.func @transform_4(%arg0: i32) -> (i32, i32) {
    %c0_i32 = arith.constant 0 : i32
    %c0_i32_0 = arith.constant 0 : i32
    %c0_i32_1 = arith.constant 0 : i32
    return %c0_i32, %c0_i32_0 : i32, i32
  }
  func.func @transform_5(%arg0: i32) -> (i32, i32) {
    %c0_i32 = arith.constant 0 : i32
    %c0_i32_0 = arith.constant 0 : i32
    %c0_i32_1 = arith.constant 0 : i32
    return %c0_i32, %c0_i32_0 : i32, i32
  }
  func.func @transform_6(%arg0: i32) -> (i32, i32, i32) {
    %c0_i32 = arith.constant 0 : i32
    %c0_i32_0 = arith.constant 0 : i32
    %c0_i32_1 = arith.constant 0 : i32
    return %arg0, %c0_i32, %c0_i32_0 : i32, i32, i32
  }
}

</mosaic_0001>

<llo_original>
// kernel: tpu_custom_call.1
$region0: #{tpu_custom_call.1}
  #allocation0 [shape = 'u32[]', space=smem, size = 0x4, offset = 0x4, fixed_abs, tag = 'smem constant byte address 0x4 - core index']
  #allocation1 [shape = 'u32[144,128]{1,0:T(1,128)}', space=vmem, size = 0x12000, scoped, tag = 'internal scratch']
  %s0 = inlined_call_operand.vmem [shape: f32[1,8,128], index: 0, kind: input, shape index: {}]
  %s1 = inlined_call_operand.hbm [shape: bf16[8,8], index: 1, kind: input, shape index: {}]
  %s2 = inlined_call_operand.vmem [shape: f32[128,128], index: 2, kind: input, shape index: {}]
  %s3 = inlined_call_operand.vmem [shape: f32[1,128], index: 3, kind: input, shape index: {}]
  %s4 = inlined_call_operand.vmem [shape: f32[128,4], index: 4, kind: input, shape index: {}]
  %s5 = inlined_call_operand.vmem [shape: f32[4,128], index: 5, kind: input, shape index: {}]
  %s6 = inlined_call_operand.hbm [shape: f32[1,8,128], index: 6, kind: output, shape index: {}]
  %s7 = sld [smem:[#allocation0]]
  $region38: #{tpu_custom_call.1} parent=0
    _
  %s9 = ssub.s32 1, %s7
  %s10 = scalar_select 0, %s9, %s7
  $region1: #{tpu_custom_call.1} parent=0
    #allocation2 [shape = 'u8[2048]{0}', space=vmem, size = 0x800, scoped, tag = 'input window, operand 1, single buffered']
    #allocation3 [shape = 's32[1]{0}', space=sflag, size = 0x4, scoped, tag = 'scoped memory for tpu_custom_call.1']
    #allocation4 [shape = 's32[1]{0}', space=sflag, size = 0x4, scoped, tag = 'scoped memory for tpu_custom_call.1']
    #allocation5 [shape = 'u8[4096]{0}', space=vmem, size = 0x1000, scoped, tag = 'output window, operand 0, single buffered']
    %11 = vsyncpa [#allocation3], 0
    %12 = vsyncpa [#allocation4], 0
    // Predicated region
    $region2: #{tpu_custom_call.1} parent=1 // pred_check
      _
    $region3: #{tpu_custom_call.1} parent=1 // pred_check_branch
      %14 = sbr.rel (0) target = $region5
    $region4: #{tpu_custom_call.1} parent=1 // pred_region
      _
    $region5: #{tpu_custom_call.1} parent=1 // pred_fallthru
      _
    // Predicated region
    $region6: #{tpu_custom_call.1} parent=1 // pred_check
      _
    $region7: #{tpu_custom_call.1} parent=1 // pred_check_branch
      %16 = sbr.rel (0) target = $region9
    $region8: #{tpu_custom_call.1} parent=1 // pred_region
      %s18 = ssub.s32 64, 64
      %19 = vsyncadd [#allocation3], %s18
      %s21 = sshll.u32 [#allocation2], 4
      %s22 = int_to_ptr.vmem [resolvable:$true] %s21
      %24 = dma.hbm_to_vmem [thread:$0]  %s1, 64, %s22, [#allocation3]
    $region9: #{tpu_custom_call.1} parent=1 // pred_fallthru
      _
    // Predicated region
    $region10: #{tpu_custom_call.1} parent=1 // pred_check
      _
    $region11: #{tpu_custom_call.1} parent=1 // pred_check_branch
      %26 = sbr.rel (0) target = $region13
    $region12: #{tpu_custom_call.1} parent=1 // pred_region
      _
    $region13: #{tpu_custom_call.1} parent=1 // pred_fallthru
      _
    // Predicated region
    $region14: #{tpu_custom_call.1} parent=1 // pred_check
      _
    $region15: #{tpu_custom_call.1} parent=1 // pred_check_branch
      %28 = sbr.rel (0) target = $region17
    $region16: #{tpu_custom_call.1} parent=1 // pred_region
      _
    $region17: #{tpu_custom_call.1} parent=1 // pred_fallthru
      _
    // Predicated region
    $region18: #{tpu_custom_call.1} parent=1 // pred_check
      _
    $region19: #{tpu_custom_call.1} parent=1 // pred_check_branch
      %30 = sbr.rel (0) target = $region21
    $region20: #{tpu_custom_call.1} parent=1 // pred_region
      _
    $region21: #{tpu_custom_call.1} parent=1 // pred_fallthru
      _
    // Predicated region
    $region22: #{tpu_custom_call.1} parent=1 // pred_check
      _
    $region23: #{tpu_custom_call.1} parent=1 // pred_check_branch
      %32 = sbr.rel (0) target = $region25
    $region24: #{tpu_custom_call.1} parent=1 // pred_region
      _
    $region25: #{tpu_custom_call.1} parent=1 // pred_fallthru
      _
    // Predicated region
    $region26: #{tpu_custom_call.1} parent=1 // pred_check
      _
    $region27: #{tpu_custom_call.1} parent=1 // pred_check_branch
      %34 = sbr.rel (0) target = $region29
    $region28: #{tpu_custom_call.1} parent=1 // pred_region
      %35 = dma.done [#allocation3], 64
    $region29: #{tpu_custom_call.1} parent=1 // pred_fallthru
      _
    %v37 = vld [vmem:[%s0] sm:$0xff]
    %v38 = vld [vmem:[%s2] sm:$0xff]
    %v39 = vld [vmem:[%s2 + $0x8] sm:$0xff]
    %v40 = vld [vmem:[%s2 + $0x10] sm:$0xff]
    %v41 = vld [vmem:[%s2 + $0x18] sm:$0xff]
    %v42 = vld [vmem:[%s2 + $0x20] sm:$0xff]
    %v43 = vld [vmem:[%s2 + $0x28] sm:$0xff]
    %v44 = vld [vmem:[%s2 + $0x30] sm:$0xff]
    %v45 = vld [vmem:[%s2 + $0x38] sm:$0xff]
    %v46 = vld [vmem:[%s2 + $0x40] sm:$0xff]
    %v47 = vld [vmem:[%s2 + $0x48] sm:$0xff]
    %v48 = vld [vmem:[%s2 + $0x50] sm:$0xff]
    %v49 = vld [vmem:[%s2 + $0x58] sm:$0xff]
    %v50 = vld [vmem:[%s2 + $0x60] sm:$0xff]
    %v51 = vld [vmem:[%s2 + $0x68] sm:$0xff]
    %v52 = vld [vmem:[%s2 + $0x70] sm:$0xff]
    %v53 = vld [vmem:[%s2 + $0x78] sm:$0xff]
    %v54 = vld [vmem:[%s3] sm:$0x1]
    %v56 = vlaneseq
    %v57 = vshrl.u32 %v56, 7
    %v58 = vsub.s32 0, %v57
    %v59 = vrot.slane %v54, %v58
    %61 = vmatprep.subr.mxu0 0.0
    %62 = vmatpush1.msra.mxu0 %v38
    %63 = vmatprep.subr.mxu0 0.0
    %64 = vmatpush1.msra.mxu0 %v39
    %65 = vmatprep.subr.mxu0 0.0
    %66 = vmatpush1.msra.mxu0 %v40
    %67 = vmatprep.subr.mxu0 0.0
    %68 = vmatpush1.msra.mxu0 %v41
    %69 = vmatprep.subr.mxu0 0.0
    %70 = vmatpush1.msra.mxu0 %v42
    %71 = vmatprep.subr.mxu0 0.0
    %72 = vmatpush1.msra.mxu0 %v43
    %73 = vmatprep.subr.mxu0 0.0
    %74 = vmatpush1.msra.mxu0 %v44
    %75 = vmatprep.subr.mxu0 0.0
    %76 = vmatpush1.msra.mxu0 %v45
    %77 = vmatprep.subr.mxu0 0.0
    %78 = vmatpush1.msra.mxu0 %v46
    %79 = vmatprep.subr.mxu0 0.0
    %80 = vmatpush1.msra.mxu0 %v47
    %81 = vmatprep.subr.mxu0 0.0
    %82 = vmatpush1.msra.mxu0 %v48
    %83 = vmatprep.subr.mxu0 0.0
    %84 = vmatpush1.msra.mxu0 %v49
    %85 = vmatprep.subr.mxu0 0.0
    %86 = vmatpush1.msra.mxu0 %v50
    %87 = vmatprep.subr.mxu0 0.0
    %88 = vmatpush1.msra.mxu0 %v51
    %89 = vmatprep.subr.mxu0 0.0
    %90 = vmatpush1.msra.mxu0 %v52
    %91 = vmatprep.subr.mxu0 0.0
    %92 = vmatpush1.msra.mxu0 %v53
    %93 = vmatprep.subr.mxu0 0.0
    %94 = vmatpush1.msra.mxu0 0.0
    %95 = vmatprep.subr.mxu0 0.0
    %96 = vmatpush1.msra.mxu0 0.0
    %97 = vmatprep.subr.mxu0 0.0
    %98 = vmatpush1.msra.mxu0 0.0
    %99 = vmatprep.subr.mxu0 0.0
    %100 = vmatpush1.msra.mxu0 0.0
    %101 = vmatprep.subr.mxu0 0.0
    %102 = vmatpush1.msra.mxu0 0.0
    %103 = vmatprep.subr.mxu0 0.0
    %104 = vmatpush1.msra.mxu0 0.0
    %105 = vmatprep.subr.mxu0 0.0
    %106 = vmatpush1.msra.mxu0 0.0
    %107 = vmatprep.subr.mxu0 0.0
    %108 = vmatpush1.msra.mxu0 0.0
    %109 = vmatprep.subr.mxu0 0.0
    %110 = vmatpush1.msra.mxu0 0.0
    %111 = vmatprep.subr.mxu0 0.0
    %112 = vmatpush1.msra.mxu0 0.0
    %113 = vmatprep.subr.mxu0 0.0
    %114 = vmatpush1.msra.mxu0 0.0
    %115 = vmatprep.subr.mxu0 0.0
    %116 = vmatpush1.msra.mxu0 0.0
    %117 = vmatprep.subr.mxu0 0.0
    %118 = vmatpush1.msra.mxu0 0.0
    %119 = vmatprep.subr.mxu0 0.0
    %120 = vmatpush1.msra.mxu0 0.0
    %121 = vmatprep.subr.mxu0 0.0
    %122 = vmatpush1.msra.mxu0 0.0
    %123 = vmatprep.subr.mxu0 0.0
    %124 = vmatpush1.msra.mxu0 0.0
    %125 = vmatprep.mubr.f32.mxu0 0.0
    %126 = vmatmul.mubr.f32.gmra.mrb[0].mxu0 %v37
    %v127 = vpop.f32.mrb[0].mxu0
    %v128 = vadd.f32 %v59, %v127
    %v129 = vpop.f32.mrb[0].mxu0
    %130 = vdwg.mxu0
    %v131 = vtanh.pop %v128
    %v132 = vld [vmem:[%s4] sm:$0xff]
    %v133 = vld [vmem:[%s4 + $0x8] sm:$0xff]
    %v134 = vld [vmem:[%s4 + $0x10] sm:$0xff]
    %v135 = vld [vmem:[%s4 + $0x18] sm:$0xff]
    %v136 = vld [vmem:[%s4 + $0x20] sm:$0xff]
    %v137 = vld [vmem:[%s4 + $0x28] sm:$0xff]
    %v138 = vld [vmem:[%s4 + $0x30] sm:$0xff]
    %v139 = vld [vmem:[%s4 + $0x38] sm:$0xff]
    %v140 = vld [vmem:[%s4 + $0x40] sm:$0xff]
    %v141 = vld [vmem:[%s4 + $0x48] sm:$0xff]
    %v142 = vld [vmem:[%s4 + $0x50] sm:$0xff]
    %v143 = vld [vmem:[%s4 + $0x58] sm:$0xff]
    %v144 = vld [vmem:[%s4 + $0x60] sm:$0xff]
    %v145 = vld [vmem:[%s4 + $0x68] sm:$0xff]
    %v146 = vld [vmem:[%s4 + $0x70] sm:$0xff]
    %v147 = vld [vmem:[%s4 + $0x78] sm:$0xff]
    %148 = vmatprep.subr.mxu0 0.0
    %149 = vmatpush1.msra.mxu0 %v132
    %150 = vmatprep.subr.mxu0 0.0
    %151 = vmatpush1.msra.mxu0 %v133
    %152 = vmatprep.subr.mxu0 0.0
    %153 = vmatpush1.msra.mxu0 %v134
    %154 = vmatprep.subr.mxu0 0.0
    %155 = vmatpush1.msra.mxu0 %v135
    %156 = vmatprep.subr.mxu0 0.0
    %157 = vmatpush1.msra.mxu0 %v136
    %158 = vmatprep.subr.mxu0 0.0
    %159 = vmatpush1.msra.mxu0 %v137
    %160 = vmatprep.subr.mxu0 0.0
    %161 = vmatpush1.msra.mxu0 %v138
    %162 = vmatprep.subr.mxu0 0.0
    %163 = vmatpush1.msra.mxu0 %v139
    %164 = vmatprep.subr.mxu0 0.0
    %165 = vmatpush1.msra.mxu0 %v140
    %166 = vmatprep.subr.mxu0 0.0
    %167 = vmatpush1.msra.mxu0 %v141
    %168 = vmatprep.subr.mxu0 0.0
    %169 = vmatpush1.msra.mxu0 %v142
    %170 = vmatprep.subr.mxu0 0.0
    %171 = vmatpush1.msra.mxu0 %v143
    %172 = vmatprep.subr.mxu0 0.0
    %173 = vmatpush1.msra.mxu0 %v144
    %174 = vmatprep.subr.mxu0 0.0
    %175 = vmatpush1.msra.mxu0 %v145
    %176 = vmatprep.subr.mxu0 0.0
    %177 = vmatpush1.msra.mxu0 %v146
    %178 = vmatprep.subr.mxu0 0.0
    %179 = vmatpush1.msra.mxu0 %v147
    %180 = vmatprep.subr.mxu0 0.0
    %181 = vmatpush1.msra.mxu0 0.0
    %182 = vmatprep.subr.mxu0 0.0
    %183 = vmatpush1.msra.mxu0 0.0
    %184 = vmatprep.subr.mxu0 0.0
    %185 = vmatpush1.msra.mxu0 0.0
    %186 = vmatprep.subr.mxu0 0.0
    %187 = vmatpush1.msra.mxu0 0.0
    %188 = vmatprep.subr.mxu0 0.0
    %189 = vmatpush1.msra.mxu0 0.0
    %190 = vmatprep.subr.mxu0 0.0
    %191 = vmatpush1.msra.mxu0 0.0
    %192 = vmatprep.subr.mxu0 0.0
    %193 = vmatpush1.msra.mxu0 0.0
    %194 = vmatprep.subr.mxu0 0.0
    %195 = vmatpush1.msra.mxu0 0.0
    %196 = vmatprep.subr.mxu0 0.0
    %197 = vmatpush1.msra.mxu0 0.0
    %198 = vmatprep.subr.mxu0 0.0
    %199 = vmatpush1.msra.mxu0 0.0
    %200 = vmatprep.subr.mxu0 0.0
    %201 = vmatpush1.msra.mxu0 0.0
    %202 = vmatprep.subr.mxu0 0.0
    %203 = vmatpush1.msra.mxu0 0.0
    %204 = vmatprep.subr.mxu0 0.0
    %205 = vmatpush1.msra.mxu0 0.0
    %206 = vmatprep.subr.mxu0 0.0
    %207 = vmatpush1.msra.mxu0 0.0
    %208 = vmatprep.subr.mxu0 0.0
    %209 = vmatpush1.msra.mxu0 0.0
    %210 = vmatprep.subr.mxu0 0.0
    %211 = vmatpush1.msra.mxu0 0.0
    %212 = vmatprep.mubr.f32.mxu0 0.0
    %213 = vmatmul.mubr.f32.gmra.mrb[0].mxu0 %v131
    %v214 = vpop.f32.mrb[0].mxu0
    %v215 = vadd.f32 0.0, %v214
    %v216 = vpop.f32.mrb[0].mxu0
    %217 = vdwg.mxu0
    %vm218 = vcmask 31744
    %v219 = vsel %vm218, %v215, -inf
    %v220 = vrot.slane %v219, 4
    %v221 = vmax.f32 %v219, %v220
    %v222 = vrot.slane %v221, 2
    %v223 = vmax.f32 %v221, %v222
    %v224 = vrot.slane %v223, 1
    %v225 = vmax.f32 %v223, %v224
    %v226 = vsub.f32 %v215, %v225
    %v227 = vmul.f32 %v226, 1.442695
    %v228 = vpow.pop %v227
    %v230 = vrot.slane %v228, 7
    %vm232 = vcmask 1040384
    %v233 = vsel %vm232, 0.0, %v230
    %v234 = vadd.f32 %v228, %v233
    %v236 = vrot.slane %v234, 6
    %vm238 = vcmask 1041408
    %v239 = vsel %vm238, 0.0, %v236
    %v240 = vadd.f32 %v234, %v239
    %v242 = vrot.slane %v240, 4
    %vm244 = vcmask 1043456
    %v245 = vsel %vm244, 0.0, %v242
    %v246 = vadd.f32 %v240, %v245
    %v247 = vld [vmem:[%s5] sm:$0xf]
    %v248 = vsel %vm218, %v228, 0
    %v251 = vsel %vm244, %v247, 0
    %253 = vmatprep.subr.mxu0 0.0
    %254 = vmatpush1.msra.mxu0 %v251
    %255 = vmatprep.subr.mxu0 0.0
    %256 = vmatpush1.msra.mxu0 0.0
    %257 = vmatprep.subr.mxu0 0.0
    %258 = vmatpush1.msra.mxu0 0.0
    %259 = vmatprep.subr.mxu0 0.0
    %260 = vmatpush1.msra.mxu0 0.0
    %261 = vmatprep.subr.mxu0 0.0
    %262 = vmatpush1.msra.mxu0 0.0
    %263 = vmatprep.subr.mxu0 0.0
    %264 = vmatpush1.msra.mxu0 0.0
    %265 = vmatprep.subr.mxu0 0.0
    %266 = vmatpush1.msra.mxu0 0.0
    %267 = vmatprep.subr.mxu0 0.0
    %268 = vmatpush1.msra.mxu0 0.0
    %269 = vmatprep.subr.mxu0 0.0
    %270 = vmatpush1.msra.mxu0 0.0
    %271 = vmatprep.subr.mxu0 0.0
    %272 = vmatpush1.msra.mxu0 0.0
    %273 = vmatprep.subr.mxu0 0.0
    %274 = vmatpush1.msra.mxu0 0.0
    %275 = vmatprep.subr.mxu0 0.0
    %276 = vmatpush1.msra.mxu0 0.0
    %277 = vmatprep.subr.mxu0 0.0
    %278 = vmatpush1.msra.mxu0 0.0
    %279 = vmatprep.subr.mxu0 0.0
    %280 = vmatpush1.msra.mxu0 0.0
    %281 = vmatprep.subr.mxu0 0.0
    %282 = vmatpush1.msra.mxu0 0.0
    %283 = vmatprep.subr.mxu0 0.0
    %284 = vmatpush1.msra.mxu0 0.0
    %285 = vmatprep.subr.mxu0 0.0
    %286 = vmatpush1.msra.mxu0 0.0
    %287 = vmatprep.subr.mxu0 0.0
    %288 = vmatpush1.msra.mxu0 0.0
    %289 = vmatprep.subr.mxu0 0.0
    %290 = vmatpush1.msra.mxu0 0.0
    %291 = vmatprep.subr.mxu0 0.0
    %292 = vmatpush1.msra.mxu0 0.0
    %293 = vmatprep.subr.mxu0 0.0
    %294 = vmatpush1.msra.mxu0 0.0
    %295 = vmatprep.subr.mxu0 0.0
    %296 = vmatpush1.msra.mxu0 0.0
    %297 = vmatprep.subr.mxu0 0.0
    %298 = vmatpush1.msra.mxu0 0.0
    %299 = vmatprep.subr.mxu0 0.0
    %300 = vmatpush1.msra.mxu0 0.0
    %301 = vmatprep.subr.mxu0 0.0
    %302 = vmatpush1.msra.mxu0 0.0
    %303 = vmatprep.subr.mxu0 0.0
    %304 = vmatpush1.msra.mxu0 0.0
    %305 = vmatprep.subr.mxu0 0.0
    %306 = vmatpush1.msra.mxu0 0.0
    %307 = vmatprep.subr.mxu0 0.0
    %308 = vmatpush1.msra.mxu0 0.0
    %309 = vmatprep.subr.mxu0 0.0
    %310 = vmatpush1.msra.mxu0 0.0
    %311 = vmatprep.subr.mxu0 0.0
    %312 = vmatpush1.msra.mxu0 0.0
    %313 = vmatprep.subr.mxu0 0.0
    %314 = vmatpush1.msra.mxu0 0.0
    %315 = vmatprep.subr.mxu0 0.0
    %316 = vmatpush1.msra.mxu0 0.0
    %317 = vmatprep.mubr.f32.mxu0 0.0
    %318 = vmatmul.mubr.f32.gmra.mrb[0].mxu0 %v248
    %v319 = vpop.f32.mrb[0].mxu0
    %v320 = vadd.f32 0.0, %v319
    %v321 = vpop.f32.mrb[0].mxu0
    %322 = vdwg.mxu0
    %v323 = vmul.f32 %v320, %v37
    %v324 = vpack.c.bf16 %v323, %v323
    %v325 = vld [vmem:[#allocation2] sm:$0xf]
    %vm326 = vcmask 64512
    %v328 = vsel %vm326, %v325, 0
    %v331 = vsel %vm244, %v324, 0
    %333 = vmatprep.subr.bf16.mxu0 0
    %334 = vmatpush1.bf16.msra.mxu0 %v331
    %335 = vmatprep.subr.bf16.mxu0 0
    %336 = vmatpush1.bf16.msra.mxu0 0
    %337 = vmatprep.subr.bf16.mxu0 0
    %338 = vmatpush1.bf16.msra.mxu0 0
    %339 = vmatprep.subr.bf16.mxu0 0
    %340 = vmatpush1.bf16.msra.mxu0 0
    %341 = vmatprep.subr.bf16.mxu0 0
    %342 = vmatpush1.bf16.msra.mxu0 0
    %343 = vmatprep.subr.bf16.mxu0 0
    %344 = vmatpush1.bf16.msra.mxu0 0
    %345 = vmatprep.subr.bf16.mxu0 0
    %346 = vmatpush1.bf16.msra.mxu0 0
    %347 = vmatprep.subr.bf16.mxu0 0
    %348 = vmatpush1.bf16.msra.mxu0 0
    %349 = vmatprep.subr.bf16.mxu0 0
    %350 = vmatpush1.bf16.msra.mxu0 0
    %351 = vmatprep.subr.bf16.mxu0 0
    %352 = vmatpush1.bf16.msra.mxu0 0
    %353 = vmatprep.subr.bf16.mxu0 0
    %354 = vmatpush1.bf16.msra.mxu0 0
    %355 = vmatprep.subr.bf16.mxu0 0
    %356 = vmatpush1.bf16.msra.mxu0 0
    %357 = vmatprep.subr.bf16.mxu0 0
    %358 = vmatpush1.bf16.msra.mxu0 0
    %359 = vmatprep.subr.bf16.mxu0 0
    %360 = vmatpush1.bf16.msra.mxu0 0
    %361 = vmatprep.subr.bf16.mxu0 0
    %362 = vmatpush1.bf16.msra.mxu0 0
    %363 = vmatprep.subr.bf16.mxu0 0
    %364 = vmatpush1.bf16.msra.mxu0 0
    %365 = vmatprep.mubr.bf16.mxu0 0
    %366 = vmatmul.mubr.bf16.gmra.mrb[0].mxu0 %v328
    %v367 = vpop.f32.mrb[0].mxu0
    %v368 = vadd.f32 0.0, %v367
    %v369 = vpop.f32.mrb[0].mxu0
    %v370 = vpop.f32.mrb[0].mxu0
    %v371 = vpop.f32.mrb[0].mxu0
    %372 = vdwg.mxu0
    %v373 = vrcp.pop %v246
    %v375 = vsel %vm218, %v373, 0
    %377 = vmatprep.subr.mxu0 0.0
    %378 = vmatpush1.msra.mxu0 %v251
    %379 = vmatprep.subr.mxu0 0.0
    %380 = vmatpush1.msra.mxu0 0.0
    %381 = vmatprep.subr.mxu0 0.0
    %382 = vmatpush1.msra.mxu0 0.0
    %383 = vmatprep.subr.mxu0 0.0
    %384 = vmatpush1.msra.mxu0 0.0
    %385 = vmatprep.subr.mxu0 0.0
    %386 = vmatpush1.msra.mxu0 0.0
    %387 = vmatprep.subr.mxu0 0.0
    %388 = vmatpush1.msra.mxu0 0.0
    %389 = vmatprep.subr.mxu0 0.0
    %390 = vmatpush1.msra.mxu0 0.0
    %391 = vmatprep.subr.mxu0 0.0
    %392 = vmatpush1.msra.mxu0 0.0
    %393 = vmatprep.subr.mxu0 0.0
    %394 = vmatpush1.msra.mxu0 0.0
    %395 = vmatprep.subr.mxu0 0.0
    %396 = vmatpush1.msra.mxu0 0.0
    %397 = vmatprep.subr.mxu0 0.0
    %398 = vmatpush1.msra.mxu0 0.0
    %399 = vmatprep.subr.mxu0 0.0
    %400 = vmatpush1.msra.mxu0 0.0
    %401 = vmatprep.subr.mxu0 0.0
    %402 = vmatpush1.msra.mxu0 0.0
    %403 = vmatprep.subr.mxu0 0.0
    %404 = vmatpush1.msra.mxu0 0.0
    %405 = vmatprep.subr.mxu0 0.0
    %406 = vmatpush1.msra.mxu0 0.0
    %407 = vmatprep.subr.mxu0 0.0
    %408 = vmatpush1.msra.mxu0 0.0
    %409 = vmatprep.subr.mxu0 0.0
    %410 = vmatpush1.msra.mxu0 0.0
    %411 = vmatprep.subr.mxu0 0.0
    %412 = vmatpush1.msra.mxu0 0.0
    %413 = vmatprep.subr.mxu0 0.0
    %414 = vmatpush1.msra.mxu0 0.0
    %415 = vmatprep.subr.mxu0 0.0
    %416 = vmatpush1.msra.mxu0 0.0
    %417 = vmatprep.subr.mxu0 0.0
    %418 = vmatpush1.msra.mxu0 0.0
    %419 = vmatprep.subr.mxu0 0.0
    %420 = vmatpush1.msra.mxu0 0.0
    %421 = vmatprep.subr.mxu0 0.0
    %422 = vmatpush1.msra.mxu0 0.0
    %423 = vmatprep.subr.mxu0 0.0
    %424 = vmatpush1.msra.mxu0 0.0
    %425 = vmatprep.subr.mxu0 0.0
    %426 = vmatpush1.msra.mxu0 0.0
    %427 = vmatprep.subr.mxu0 0.0
    %428 = vmatpush1.msra.mxu0 0.0
    %429 = vmatprep.subr.mxu0 0.0
    %430 = vmatpush1.msra.mxu0 0.0
    %431 = vmatprep.subr.mxu0 0.0
    %432 = vmatpush1.msra.mxu0 0.0
    %433 = vmatprep.subr.mxu0 0.0
    %434 = vmatpush1.msra.mxu0 0.0
    %435 = vmatprep.subr.mxu0 0.0
    %436 = vmatpush1.msra.mxu0 0.0
    %437 = vmatprep.subr.mxu0 0.0
    %438 = vmatpush1.msra.mxu0 0.0
    %439 = vmatprep.subr.mxu0 0.0
    %440 = vmatpush1.msra.mxu0 0.0
    %441 = vmatprep.mubr.f32.mxu0 0.0
    %442 = vmatmul.mubr.f32.gmra.mrb[0].mxu0 %v375
    %v443 = vpop.f32.mrb[0].mxu0
    %v444 = vadd.f32 0.0, %v443
    %v445 = vpop.f32.mrb[0].mxu0
    %446 = vdwg.mxu0
    %v447 = vmul.f32 %v368, %v444
    %448 = vst [vmem:[#allocation5] sm:$0xff] %v447
    // Predicated region
    $region30: #{tpu_custom_call.1} parent=1 // pred_check
      _
    $region31: #{tpu_custom_call.1} parent=1 // pred_check_branch
      %450 = sbr.rel (0) target = $region33
    $region32: #{tpu_custom_call.1} parent=1 // pred_region
      %s452 = ssub.s32 128, 128
      %453 = vsyncadd [#allocation4], %s452
      %s455 = sshll.u32 [#allocation5], 4
      %s456 = int_to_ptr.vmem [resolvable:$true] %s455
      %458 = dma.vmem_to_hbm [thread:$0]  %s456, 128, %s6, [#allocation4]
    $region33: #{tpu_custom_call.1} parent=1 // pred_fallthru
      _
    // Predicated region
    $region34: #{tpu_custom_call.1} parent=1 // pred_check
      _
    $region35: #{tpu_custom_call.1} parent=1 // pred_check_branch
      %460 = sbr.rel (0) target = $region37
    $region36: #{tpu_custom_call.1} parent=1 // pred_region
      %461 = dma.done [#allocation4], 128
    $region37: #{tpu_custom_call.1} parent=1 // pred_fallthru
      _
    %462 = vsyncpa [#allocation3], 1
    %463 = vsyncpa [#allocation4], 1

</llo_original>
